<compile_context>
chip_gen: v7x
topology: tpu7x:2x2x1
jax: 0.10.0
libtpu: 0.0.40
codegen_flags: <defaults>
</compile_context>

<pallas_src>
import functools

import jax
import jax.numpy as jnp
import numpy as np
from jax.experimental import pallas as pl
from jax.experimental.pallas import tpu as pltpu


def pair_interaction_kernel(f1_ref, f2_ref, w1_ref, b1_ref, w2_ref,
                            wint_ref, bint_ref, out_ref,
                            *, TB, N2, F, OUT):
    f32 = jnp.float32
    bf16 = jnp.bfloat16

    # fc1: (TB, d1) @ (d1, F) + b1   -- bf16 operands, f32 accumulate
    a1 = jnp.dot(f1_ref[...].astype(bf16), w1_ref[...],
                 preferred_element_type=f32) + b1_ref[...]          # (TB, F)

    # fc2 (no bias): (N2, d2) @ (d2, F)
    a2 = jnp.dot(f2_ref[...].astype(bf16), w2_ref[...],
                 preferred_element_type=f32)                        # (N2, F)

    # broadcast add + ReLU (Dropout == identity in eval mode), f32
    h = jnp.maximum(a1[:, None, :] + a2[None, :, :], 0.0)           # (TB, N2, F)

    # interaction Linear: (TB*N2, F) @ (F, OUT) + bint
    # N2 % 8 == 0 and F % 128 == 0 -> reshape is a pure layout collapse.
    out = jnp.dot(h.reshape(TB * N2, F).astype(bf16), wint_ref[...],
                  preferred_element_type=f32) + bint_ref[...]       # (TB*N2, OUT)

    out_ref[...] = out.reshape(TB, N2, OUT)


def pair_interaction_pallas(features1, features2, params, *, block_n1=8):
    N1, d1 = features1.shape
    N2, d2 = features2.shape
    F = params['w1'].shape[1]
    OUT = params['wint'].shape[1]

    TB = min(block_n1, N1)
    assert N1 % TB == 0, "N1 must be a multiple of the N1 tile"
    assert N2 % 8 == 0 and F % 128 == 0 and OUT % 128 == 0, \
        "keep N2 sublane-aligned and F/OUT lane-aligned"
    grid = (N1 // TB,)

    # Weights fed to the MXU in bf16 (also halves their HBM->VMEM DMA bytes);
    # biases stay f32.
    w1 = params['w1'].astype(jnp.bfloat16)
    w2 = params['w2'].astype(jnp.bfloat16)
    wint = params['wint'].astype(jnp.bfloat16)
    b1 = params['b1'].astype(jnp.float32)
    bint = params['bint'].astype(jnp.float32)

    kernel = functools.partial(pair_interaction_kernel,
                               TB=TB, N2=N2, F=F, OUT=OUT)

    return pl.pallas_call(
        kernel,
        out_shape=jax.ShapeDtypeStruct((N1, N2, OUT), jnp.float32),
        grid=grid,
        in_specs=[
            pl.BlockSpec((TB, d1), lambda i: (i, 0)),   # features1 tile
            pl.BlockSpec((N2, d2), lambda i: (0, 0)),   # features2 (resident)
            pl.BlockSpec((d1, F), lambda i: (0, 0)),    # fc1 weight
            pl.BlockSpec((1, F), lambda i: (0, 0)),     # fc1 bias
            pl.BlockSpec((d2, F), lambda i: (0, 0)),    # fc2 weight
            pl.BlockSpec((F, OUT), lambda i: (0, 0)),   # interaction weight
            pl.BlockSpec((1, OUT), lambda i: (0, 0)),   # interaction bias
        ],
        out_specs=pl.BlockSpec((TB, N2, OUT), lambda i: (i, 0, 0)),
        compiler_params=pltpu.CompilerParams(
            dimension_semantics=("parallel",),
            vmem_limit_bytes=64 * 1024 * 1024),
    )(features1, features2, w1, b1, w2, wint, bint)


def init_params(key, d1, d2, forward_dim, out_dim):
    ks = jax.random.split(key, 5)
    n = lambda k, shape, s: jax.random.normal(k, shape, jnp.float32) * s
    # Weights stored transposed (in_features, out_features): y = x @ W + b.
    return {
        'w1':   n(ks[0], (d1, forward_dim), 1.0 / np.sqrt(d1)),
        'b1':   n(ks[1], (1, forward_dim), 0.1),
        'w2':   n(ks[2], (d2, forward_dim), 1.0 / np.sqrt(d2)),   # no bias
        'wint': n(ks[3], (forward_dim, out_dim), 1.0 / np.sqrt(forward_dim)),
        'bint': n(ks[4], (1, out_dim), 0.1),
    }


# ---------------- pure-JAX f32 reference (same math) ----------------
def pair_interaction_ref(features1, features2, p):
    a1 = features1 @ p['w1'] + p['b1']                  # (N1, F)
    a2 = features2 @ p['w2']                            # (N2, F)
    h = jnp.maximum(a1[:, None, :] + a2[None, :, :], 0.0)
    return h @ p['wint'] + p['bint']                    # (N1, N2, OUT)


if __name__ == "__main__":
    # Small shapes consistent with the module: N1 video clips, N2 text nodes.
    N1, N2 = 16, 8
    d1, d2 = 128, 128
    forward_dim, out_dim = 256, 128

    key = jax.random.PRNGKey(0)
    k1, k2, kp = jax.random.split(key, 3)
    features1 = jax.random.normal(k1, (N1, d1), jnp.float32)
    features2 = jax.random.normal(k2, (N2, d2), jnp.float32)
    params = init_params(kp, d1, d2, forward_dim, out_dim)

    out = pair_interaction_pallas(features1, features2, params, block_n1=8)
    jax.block_until_ready(out)

    ref = pair_interaction_ref(features1, features2, params)
    assert out.shape == (N1, N2, out_dim)
    # bf16 MXU inputs with f32 accumulation: small, bounded perturbation.
    assert np.allclose(np.asarray(out), np.asarray(ref), rtol=3e-2, atol=3e-2)

    print("KERNEL_OK")
</pallas_src>

<mosaic_0001>
module attributes {stable_mosaic.version = 11 : i64} {
  func.func @pair_interaction_kernel(%arg0: i32, %arg1: memref<8x128xf32, #tpu.memory_space<vmem>>, %arg2: memref<8x128xf32, #tpu.memory_space<vmem>>, %arg3: memref<128x256xbf16, #tpu.memory_space<vmem>>, %arg4: memref<1x256xf32, #tpu.memory_space<vmem>>, %arg5: memref<128x256xbf16, #tpu.memory_space<vmem>>, %arg6: memref<256x128xbf16, #tpu.memory_space<vmem>>, %arg7: memref<1x128xf32, #tpu.memory_space<vmem>>, %arg8: memref<8x8x128xf32, #tpu.memory_space<vmem>>) attributes {dimension_semantics = [#tpu.dimension_semantics<parallel>], iteration_bounds = array<i64: 2>, scalar_prefetch = 0 : i64, scratch_operands = 0 : i64, tpu.core_type = #tpu.core_type<tc>, window_params = [{transform_indices = @transform_0, window_bounds = array<i64: 8, 128>}, {pipeline_mode = #tpu.pipeline_mode<synchronous>, transform_indices = @transform_1, window_bounds = array<i64: 8, 128>}, {pipeline_mode = #tpu.pipeline_mode<synchronous>, transform_indices = @transform_2, window_bounds = array<i64: 128, 256>}, {pipeline_mode = #tpu.pipeline_mode<synchronous>, transform_indices = @transform_3, window_bounds = array<i64: 1, 256>}, {pipeline_mode = #tpu.pipeline_mode<synchronous>, transform_indices = @transform_4, window_bounds = array<i64: 128, 256>}, {pipeline_mode = #tpu.pipeline_mode<synchronous>, transform_indices = @transform_5, window_bounds = array<i64: 256, 128>}, {pipeline_mode = #tpu.pipeline_mode<synchronous>, transform_indices = @transform_6, window_bounds = array<i64: 1, 128>}, {transform_indices = @transform_7, window_bounds = array<i64: 8, 8, 128>}]} {
    %c0 = arith.constant 0 : index
    %c0_0 = arith.constant 0 : index
    %0 = vector.load %arg1[%c0, %c0_0] : memref<8x128xf32, #tpu.memory_space<vmem>>, vector<8x128xf32>
    %1 = arith.truncf %0 : vector<8x128xf32> to vector<8x128xbf16>
    %c0_1 = arith.constant 0 : index
    %c0_2 = arith.constant 0 : index
    %2 = vector.load %arg3[%c0_1, %c0_2] : memref<128x256xbf16, #tpu.memory_space<vmem>>, vector<128x256xbf16>
    %cst = arith.constant dense<0.000000e+00> : vector<8x256xf32>
    %3 = tpu.matmul %1, %2, %cst {dimension_numbers = #tpu.dot_dimension_numbers<[1], [0], [0], [1], [0, 0, 1, 1], [], []>} : vector<8x128xbf16>, vector<128x256xbf16>, vector<8x256xf32> -> vector<8x256xf32>
    %c0_3 = arith.constant 0 : index
    %c0_4 = arith.constant 0 : index
    %4 = vector.load %arg4[%c0_3, %c0_4] : memref<1x256xf32, #tpu.memory_space<vmem>>, vector<1x256xf32>
    %5 = vector.broadcast %4 : vector<1x256xf32> to vector<8x256xf32>
    %6 = arith.addf %3, %5 : vector<8x256xf32>
    %c0_5 = arith.constant 0 : index
    %c0_6 = arith.constant 0 : index
    %7 = vector.load %arg2[%c0_5, %c0_6] : memref<8x128xf32, #tpu.memory_space<vmem>>, vector<8x128xf32>
    %8 = arith.truncf %7 : vector<8x128xf32> to vector<8x128xbf16>
    %c0_7 = arith.constant 0 : index
    %c0_8 = arith.constant 0 : index
    %9 = vector.load %arg5[%c0_7, %c0_8] : memref<128x256xbf16, #tpu.memory_space<vmem>>, vector<128x256xbf16>
    %cst_9 = arith.constant dense<0.000000e+00> : vector<8x256xf32>
    %10 = tpu.matmul %8, %9, %cst_9 {dimension_numbers = #tpu.dot_dimension_numbers<[1], [0], [0], [1], [0, 0, 1, 1], [], []>} : vector<8x128xbf16>, vector<128x256xbf16>, vector<8x256xf32> -> vector<8x256xf32>
    %11 = vector.shape_cast %6 : vector<8x256xf32> to vector<8x1x256xf32>
    %12 = vector.shape_cast %10 : vector<8x256xf32> to vector<1x8x256xf32>
    %13 = vector.broadcast %11 : vector<8x1x256xf32> to vector<8x8x256xf32>
    %14 = vector.broadcast %12 : vector<1x8x256xf32> to vector<8x8x256xf32>
    %15 = arith.addf %13, %14 : vector<8x8x256xf32>
    %cst_10 = arith.constant 0.000000e+00 : f32
    %16 = vector.broadcast %cst_10 : f32 to vector<8x8x256xf32>
    %17 = arith.maximumf %15, %16 : vector<8x8x256xf32>
    %18 = vector.shape_cast %17 : vector<8x8x256xf32> to vector<64x256xf32>
    %19 = arith.truncf %18 : vector<64x256xf32> to vector<64x256xbf16>
    %c0_11 = arith.constant 0 : index
    %c0_12 = arith.constant 0 : index
    %20 = vector.load %arg6[%c0_11, %c0_12] : memref<256x128xbf16, #tpu.memory_space<vmem>>, vector<256x128xbf16>
    %cst_13 = arith.constant dense<0.000000e+00> : vector<64x128xf32>
    %21 = tpu.matmul %19, %20, %cst_13 {dimension_numbers = #tpu.dot_dimension_numbers<[1], [0], [0], [1], [0, 0, 1, 1], [], []>} : vector<64x256xbf16>, vector<256x128xbf16>, vector<64x128xf32> -> vector<64x128xf32>
    %c0_14 = arith.constant 0 : index
    %c0_15 = arith.constant 0 : index
    %22 = vector.load %arg7[%c0_14, %c0_15] : memref<1x128xf32, #tpu.memory_space<vmem>>, vector<1x128xf32>
    %23 = vector.broadcast %22 : vector<1x128xf32> to vector<64x128xf32>
    %24 = arith.addf %21, %23 : vector<64x128xf32>
    %25 = vector.shape_cast %24 : vector<64x128xf32> to vector<8x8x128xf32>
    %c0_16 = arith.constant 0 : index
    %c0_17 = arith.constant 0 : index
    %c0_18 = arith.constant 0 : index
    %26 = vector.load %arg8[%c0_16, %c0_17, %c0_18] : memref<8x8x128xf32, #tpu.memory_space<vmem>>, vector<8x8x128xf32>
    tpu.vector_store %arg8[%c0_16, %c0_17, %c0_18], %25 {strides = array<i32>} : memref<8x8x128xf32, #tpu.memory_space<vmem>>, vector<8x8x128xf32>,
    return
  }
  func.func @transform_0(%arg0: i32) -> (i32, i32) {
    %c0_i32 = arith.constant 0 : i32
    %c0_i32_0 = arith.constant 0 : i32
    return %arg0, %c0_i32 : i32, i32
  }
  func.func @transform_1(%arg0: i32) -> (i32, i32) {
    %c0_i32 = arith.constant 0 : i32
    %c0_i32_0 = arith.constant 0 : i32
    %c0_i32_1 = arith.constant 0 : i32
    return %c0_i32, %c0_i32_0 : i32, i32
  }
  func.func @transform_2(%arg0: i32) -> (i32, i32) {
    %c0_i32 = arith.constant 0 : i32
    %c0_i32_0 = arith.constant 0 : i32
    %c0_i32_1 = arith.constant 0 : i32
    return %c0_i32, %c0_i32_0 : i32, i32
  }
  func.func @transform_3(%arg0: i32) -> (i32, i32) {
    %c0_i32 = arith.constant 0 : i32
    %c0_i32_0 = arith.constant 0 : i32
    %c0_i32_1 = arith.constant 0 : i32
    return %c0_i32, %c0_i32_0 : i32, i32
  }
  func.func @transform_4(%arg0: i32) -> (i32, i32) {
    %c0_i32 = arith.constant 0 : i32
    %c0_i32_0 = arith.constant 0 : i32
    %c0_i32_1 = arith.constant 0 : i32
    return %c0_i32, %c0_i32_0 : i32, i32
  }
  func.func @transform_5(%arg0: i32) -> (i32, i32) {
    %c0_i32 = arith.constant 0 : i32
    %c0_i32_0 = arith.constant 0 : i32
    %c0_i32_1 = arith.constant 0 : i32
    return %c0_i32, %c0_i32_0 : i32, i32
  }
  func.func @transform_6(%arg0: i32) -> (i32, i32) {
    %c0_i32 = arith.constant 0 : i32
    %c0_i32_0 = arith.constant 0 : i32
    %c0_i32_1 = arith.constant 0 : i32
    return %c0_i32, %c0_i32_0 : i32, i32
  }
  func.func @transform_7(%arg0: i32) -> (i32, i32, i32) {
    %c0_i32 = arith.constant 0 : i32
    %c0_i32_0 = arith.constant 0 : i32
    %c0_i32_1 = arith.constant 0 : i32
    return %arg0, %c0_i32, %c0_i32_0 : i32, i32, i32
  }
}

</mosaic_0001>

<llo_original>
// kernel: tpu_custom_call.1
$region0: #{tpu_custom_call.1}
  #allocation0 [shape = 'u32[]', space=smem, size = 0x4, offset = 0x4, fixed_abs, tag = 'smem constant byte address 0x4 - core index']
  #allocation1 [shape = 'u32[144,128]{1,0:T(1,128)}', space=vmem, size = 0x12000, scoped, tag = 'internal scratch']
  %s0 = inlined_call_operand.hbm [shape: f32[16,128], index: 0, kind: input, shape index: {}]
  %s1 = inlined_call_operand.hbm [shape: f32[8,128], index: 1, kind: input, shape index: {}]
  %s2 = inlined_call_operand.hbm [shape: bf16[128,256], index: 2, kind: input, shape index: {}]
  %s3 = inlined_call_operand.hbm [shape: f32[1,256], index: 3, kind: input, shape index: {}]
  %s4 = inlined_call_operand.hbm [shape: bf16[128,256], index: 4, kind: input, shape index: {}]
  %s5 = inlined_call_operand.hbm [shape: bf16[256,128], index: 5, kind: input, shape index: {}]
  %s6 = inlined_call_operand.hbm [shape: f32[1,128], index: 6, kind: input, shape index: {}]
  %s7 = inlined_call_operand.hbm [shape: f32[16,8,128], index: 7, kind: output, shape index: {}]
  %s8 = sld [smem:[#allocation0]]
  $region89: #{tpu_custom_call.1} parent=0
    _
  %s10 = ssub.s32 1, %s8
  %s11 = scalar_select 0, %s10, %s8
  $region1: #{tpu_custom_call.1} parent=0
    #allocation2 [shape = 'u8[8192]{0}', space=vmem, size = 0x2000, scoped, tag = 'input window, operand 0']
    #allocation3 [shape = 's32[2]{0}', space=sflag, size = 0x8, scoped, tag = 'scoped memory for tpu_custom_call.1']
    #allocation4 [shape = 's32[2]{0}', space=sflag, size = 0x8, scoped, tag = 'scoped memory for tpu_custom_call.1']
    #allocation5 [shape = 'u8[4096]{0}', space=vmem, size = 0x1000, scoped, tag = 'input window, operand 1, single buffered']
    #allocation6 [shape = 's32[1]{0}', space=sflag, size = 0x4, scoped, tag = 'scoped memory for tpu_custom_call.1']
    #allocation7 [shape = 'u8[65536]{0}', space=vmem, size = 0x10000, scoped, tag = 'input window, operand 2, single buffered']
    #allocation8 [shape = 'u8[1024]{0}', space=vmem, size = 0x400, scoped, tag = 'input window, operand 3, single buffered']
    #allocation9 [shape = 's32[1]{0}', space=sflag, size = 0x4, scoped, tag = 'scoped memory for tpu_custom_call.1']
    #allocation10 [shape = 'u8[65536]{0}', space=vmem, size = 0x10000, scoped, tag = 'input window, operand 4, single buffered']
    #allocation11 [shape = 'u8[65536]{0}', space=vmem, size = 0x10000, scoped, tag = 'input window, operand 5, single buffered']
    #allocation12 [shape = 's32[1]{0}', space=sflag, size = 0x4, scoped, tag = 'scoped memory for tpu_custom_call.1']
    #allocation13 [shape = 'u8[512]{0}', space=vmem, size = 0x400, scoped, tag = 'input window, operand 6, single buffered']
    #allocation14 [shape = 'u8[65536]{0}', space=vmem, size = 0x10000, scoped, tag = 'output window, operand 0']
    %12 = vsyncpa [#allocation3], 0
    %s13 = scalar_lea.sflag [#allocation3], 1
    %14 = vsyncpa %s13, 0
    %15 = vsyncpa [#allocation6], 0
    %16 = vsyncpa [#allocation9], 0
    %17 = vsyncpa [#allocation12], 0
    %18 = vsyncpa [#allocation4], 0
    %s19 = scalar_lea.sflag [#allocation4], 1
    %20 = vsyncpa %s19, 0
    loop: start=0, step=1, limit=4
    $region2: #{tpu_custom_call.1} parent=1 // loop_pre_header
      _
    $region3: #{tpu_custom_call.1} parent=1 // loop_header
      %s22 = sphi 0, %s26
      %p23 = scmp.ge.s32.totalorder %s22, 4
      %s32 = sphi 0, %s34
      %s35 = sphi 0, %s32
      %s36 = sphi 0, %s35
      %s52 = sphi 0, %s36
      %s56 = sphi 0, %s56
      %s58 = sphi 0, %s56
      %s59 = sphi 0, %s58
      %s73 = sphi 0, %s59
      %s77 = sphi 0, %s77
      %s79 = sphi 0, %s77
      %s80 = sphi 0, %s79
      %s94 = sphi 0, %s80
      %s98 = sphi 0, %s98
      %s100 = sphi 0, %s98
      %s101 = sphi 0, %s100
      %s115 = sphi 0, %s101
      %s119 = sphi 0, %s119
      %s121 = sphi 0, %s119
      %s122 = sphi 0, %s121
      %s136 = sphi 0, %s122
      %s140 = sphi 0, %s140
      %s142 = sphi 0, %s140
      %s143 = sphi 0, %s142
      %s157 = sphi 0, %s143
      %s161 = sphi 0, %s161
      %s163 = sphi 0, %s161
      %s164 = sphi 0, %s163
      %s178 = sphi 0, %s164
      %s184 = sphi 0, %s186
      %s187 = sphi 0, %s184
      %s188 = sphi 0, %s187
      %s204 = sphi 0, %s188
    $region4: #{tpu_custom_call.1} parent=1 // loop_header_branch
      %25 = sbr.rel (%p23) target = $region8
    $region5: #{tpu_custom_call.1} parent=1 // loop_body
      %s27 = ssub.s32 %s22, 1
      %s28 = ssub.s32 %s22, 2
      %s29 = sadd.s32 %s22, 1
      %s30 = ssub.s32 %s22, %s29
      %p31 = scmp.eq.s32.totalorder %s30, 0
      %s33 = sadd.s32 %s32, 1
      %s34 = scalar_select %p31, %s32, %s33
      %p37 = pneg %p31
      %p38 = scmp.eq.s32.totalorder %s22, 1
      %p39 = por %p37, %p38
      %p40 = scmp.ne.s32.totalorder %s32, %s35
      %p41 = scmp.eq.s32.totalorder %s22, 0
      %p42 = por %p40, %p41
      %p43 = scmp.ne.s32.totalorder %s32, %s35
      %p44 = scmp.eq.s32.totalorder %s27, 1
      %p45 = por %p43, %p44
      %p46 = scmp.ne.s32.totalorder %s35, %s36
      %p47 = scmp.eq.s32.totalorder %s27, 0
      %p48 = por %p46, %p47
      %p49 = scmp.ne.s32.totalorder %s35, %s36
      %p50 = scmp.eq.s32.totalorder %s28, 1
      %p51 = por %p49, %p50
      %p53 = scmp.ne.s32.totalorder %s36, %s52
      %p54 = scmp.eq.s32.totalorder %s28, 0
      %p55 = por %p53, %p54
      %s57 = sadd.s32 %s56, 1
      %p60 = scmp.eq.s32.totalorder %s22, 1
      %p61 = scmp.ne.s32.totalorder %s56, %s58
      %p62 = scmp.eq.s32.totalorder %s22, 0
      %p63 = por %p61, %p62
      %p64 = scmp.ne.s32.totalorder %s56, %s58
      %p65 = scmp.eq.s32.totalorder %s27, 1
      %p66 = por %p64, %p65
      %p67 = scmp.ne.s32.totalorder %s58, %s59
      %p68 = scmp.eq.s32.totalorder %s27, 0
      %p69 = por %p67, %p68
      %p70 = scmp.ne.s32.totalorder %s58, %s59
      %p71 = scmp.eq.s32.totalorder %s28, 1
      %p72 = por %p70, %p71
      %p74 = scmp.ne.s32.totalorder %s59, %s73
      %p75 = scmp.eq.s32.totalorder %s28, 0
      %p76 = por %p74, %p75
      %s78 = sadd.s32 %s77, 1
      %p81 = scmp.eq.s32.totalorder %s22, 1
      %p82 = scmp.ne.s32.totalorder %s77, %s79
      %p83 = scmp.eq.s32.totalorder %s22, 0
      %p84 = por %p82, %p83
      %p85 = scmp.ne.s32.totalorder %s77, %s79
      %p86 = scmp.eq.s32.totalorder %s27, 1
      %p87 = por %p85, %p86
      %p88 = scmp.ne.s32.totalorder %s79, %s80
      %p89 = scmp.eq.s32.totalorder %s27, 0
      %p90 = por %p88, %p89
      %p91 = scmp.ne.s32.totalorder %s79, %s80
      %p92 = scmp.eq.s32.totalorder %s28, 1
      %p93 = por %p91, %p92
      %p95 = scmp.ne.s32.totalorder %s80, %s94
      %p96 = scmp.eq.s32.totalorder %s28, 0
      %p97 = por %p95, %p96
      %s99 = sadd.s32 %s98, 1
      %p102 = scmp.eq.s32.totalorder %s22, 1
      %p103 = scmp.ne.s32.totalorder %s98, %s100
      %p104 = scmp.eq.s32.totalorder %s22, 0
      %p105 = por %p103, %p104
      %p106 = scmp.ne.s32.totalorder %s98, %s100
      %p107 = scmp.eq.s32.totalorder %s27, 1
      %p108 = por %p106, %p107
      %p109 = scmp.ne.s32.totalorder %s100, %s101
      %p110 = scmp.eq.s32.totalorder %s27, 0
      %p111 = por %p109, %p110
      %p112 = scmp.ne.s32.totalorder %s100, %s101
      %p113 = scmp.eq.s32.totalorder %s28, 1
      %p114 = por %p112, %p113
      %p116 = scmp.ne.s32.totalorder %s101, %s115
      %p117 = scmp.eq.s32.totalorder %s28, 0
      %p118 = por %p116, %p117
      %s120 = sadd.s32 %s119, 1
      %p123 = scmp.eq.s32.totalorder %s22, 1
      %p124 = scmp.ne.s32.totalorder %s119, %s121
      %p125 = scmp.eq.s32.totalorder %s22, 0
      %p126 = por %p124, %p125
      %p127 = scmp.ne.s32.totalorder %s119, %s121
      %p128 = scmp.eq.s32.totalorder %s27, 1
      %p129 = por %p127, %p128
      %p130 = scmp.ne.s32.totalorder %s121, %s122
      %p131 = scmp.eq.s32.totalorder %s27, 0
      %p132 = por %p130, %p131
      %p133 = scmp.ne.s32.totalorder %s121, %s122
      %p134 = scmp.eq.s32.totalorder %s28, 1
      %p135 = por %p133, %p134
      %p137 = scmp.ne.s32.totalorder %s122, %s136
      %p138 = scmp.eq.s32.totalorder %s28, 0
      %p139 = por %p137, %p138
      %s141 = sadd.s32 %s140, 1
      %p144 = scmp.eq.s32.totalorder %s22, 1
      %p145 = scmp.ne.s32.totalorder %s140, %s142
      %p146 = scmp.eq.s32.totalorder %s22, 0
      %p147 = por %p145, %p146
      %p148 = scmp.ne.s32.totalorder %s140, %s142
      %p149 = scmp.eq.s32.totalorder %s27, 1
      %p150 = por %p148, %p149
      %p151 = scmp.ne.s32.totalorder %s142, %s143
      %p152 = scmp.eq.s32.totalorder %s27, 0
      %p153 = por %p151, %p152
      %p154 = scmp.ne.s32.totalorder %s142, %s143
      %p155 = scmp.eq.s32.totalorder %s28, 1
      %p156 = por %p154, %p155
      %p158 = scmp.ne.s32.totalorder %s143, %s157
      %p159 = scmp.eq.s32.totalorder %s28, 0
      %p160 = por %p158, %p159
      %s162 = sadd.s32 %s161, 1
      %p165 = scmp.eq.s32.totalorder %s22, 1
      %p166 = scmp.ne.s32.totalorder %s161, %s163
      %p167 = scmp.eq.s32.totalorder %s22, 0
      %p168 = por %p166, %p167
      %p169 = scmp.ne.s32.totalorder %s161, %s163
      %p170 = scmp.eq.s32.totalorder %s27, 1
      %p171 = por %p169, %p170
      %p172 = scmp.ne.s32.totalorder %s163, %s164
      %p173 = scmp.eq.s32.totalorder %s27, 0
      %p174 = por %p172, %p173
      %p175 = scmp.ne.s32.totalorder %s163, %s164
      %p176 = scmp.eq.s32.totalorder %s28, 1
      %p177 = por %p175, %p176
      %p179 = scmp.ne.s32.totalorder %s164, %s178
      %p180 = scmp.eq.s32.totalorder %s28, 0
      %p181 = por %p179, %p180
      %s182 = ssub.s32 %s22, %s29
      %p183 = scmp.eq.s32.totalorder %s182, 0
      %s185 = sadd.s32 %s184, 1
      %s186 = scalar_select %p183, %s184, %s185
      %p189 = pneg %p183
      %p190 = scmp.eq.s32.totalorder %s22, 1
      %p191 = por %p189, %p190
      %p192 = scmp.ne.s32.totalorder %s184, %s187
      %p193 = scmp.eq.s32.totalorder %s22, 0
      %p194 = por %p192, %p193
      %p195 = scmp.ne.s32.totalorder %s184, %s187
      %p196 = scmp.eq.s32.totalorder %s27, 1
      %p197 = por %p195, %p196
      %p198 = scmp.ne.s32.totalorder %s187, %s188
      %p199 = scmp.eq.s32.totalorder %s27, 0
      %p200 = por %p198, %p199
      %p201 = scmp.ne.s32.totalorder %s187, %s188
      %p202 = scmp.eq.s32.totalorder %s28, 1
      %p203 = por %p201, %p202
      %p205 = scmp.ne.s32.totalorder %s188, %s204
      %p206 = scmp.eq.s32.totalorder %s28, 0
      %p207 = por %p205, %p206
      %p208 = scmp.le.s32.totalorder 1, %s22
      %p209 = scmp.lt.s32.totalorder %s22, 3
      %p210 = pnand %p208, %p209
      %p211 = pneg %p210
      // Predicated region
      $region9: #{tpu_custom_call.1} parent=5 // pred_check
        _
      $region10: #{tpu_custom_call.1} parent=5 // pred_check_branch
        %213 = sbr.rel (%p210) target = $region12
      $region11: #{tpu_custom_call.1} parent=5 // pred_region
        %s214 = ssub.s32 %s22, 1
        // Predicated region
        $region13: #{tpu_custom_call.1} parent=11 // pred_check
          %p215 = pneg %p69
        $region14: #{tpu_custom_call.1} parent=11 // pred_check_branch
          %217 = sbr.rel (%p215) target = $region16
        $region15: #{tpu_custom_call.1} parent=11 // pred_region
          %s219 = ssub.s32 128, 128
          %220 = vsyncadd [#allocation6], %s219
          %s222 = sshll.u32 [#allocation5], 4
          %s223 = int_to_ptr.vmem [resolvable:$true] %s222
          %225 = dma.hbm_to_vmem [thread:$0]  %s1, 128, %s223, [#allocation6]
        $region16: #{tpu_custom_call.1} parent=11 // pred_fallthru
          _
        // Predicated region
        $region17: #{tpu_custom_call.1} parent=11 // pred_check
          %p226 = pneg %p90
        $region18: #{tpu_custom_call.1} parent=11 // pred_check_branch
          %228 = sbr.rel (%p226) target = $region20
        $region19: #{tpu_custom_call.1} parent=11 // pred_region
          %s230 = ssub.s32 2048, 2048
          %231 = vsyncadd [#allocation6], %s230
          %s232 = sshll.u32 [#allocation7], 4
          %s233 = int_to_ptr.vmem [resolvable:$true] %s232
          %238 = dma.hbm_to_vmem [thread:$0]  %s2, 2048, %s233, [#allocation6], 128, 128, 8
        $region20: #{tpu_custom_call.1} parent=11 // pred_fallthru
          _
        // Predicated region
        $region21: #{tpu_custom_call.1} parent=11 // pred_check
          %p239 = pneg %p111
        $region22: #{tpu_custom_call.1} parent=11 // pred_check_branch
          %241 = sbr.rel (%p239) target = $region24
        $region23: #{tpu_custom_call.1} parent=11 // pred_region
          %s243 = ssub.s32 32, 32
          %244 = vsyncadd [#allocation9], %s243
          %s246 = sshll.u32 [#allocation8], 4
          %s247 = int_to_ptr.vmem [resolvable:$true] %s246
          %249 = dma.hbm_to_vmem [thread:$0]  %s3, 32, %s247, [#allocation9]
        $region24: #{tpu_custom_call.1} parent=11 // pred_fallthru
          _
        // Predicated region
        $region25: #{tpu_custom_call.1} parent=11 // pred_check
          %p250 = pneg %p132
        $region26: #{tpu_custom_call.1} parent=11 // pred_check_branch
          %252 = sbr.rel (%p250) target = $region28
        $region27: #{tpu_custom_call.1} parent=11 // pred_region
          %s254 = ssub.s32 2048, 2048
          %255 = vsyncadd [#allocation9], %s254
          %s256 = sshll.u32 [#allocation10], 4
          %s257 = int_to_ptr.vmem [resolvable:$true] %s256
          %262 = dma.hbm_to_vmem [thread:$0]  %s4, 2048, %s257, [#allocation9], 128, 128, 8
        $region28: #{tpu_custom_call.1} parent=11 // pred_fallthru
          _
        // Predicated region
        $region29: #{tpu_custom_call.1} parent=11 // pred_check
          %p263 = pneg %p153
        $region30: #{tpu_custom_call.1} parent=11 // pred_check_branch
          %265 = sbr.rel (%p263) target = $region32
        $region31: #{tpu_custom_call.1} parent=11 // pred_region
          %s267 = ssub.s32 2048, 2048
          %268 = vsyncadd [#allocation12], %s267
          %s269 = sshll.u32 [#allocation11], 4
          %s270 = int_to_ptr.vmem [resolvable:$true] %s269
          %275 = dma.hbm_to_vmem [thread:$0]  %s5, 2048, %s270, [#allocation12], 64, 64, 4
        $region32: #{tpu_custom_call.1} parent=11 // pred_fallthru
          _
        // Predicated region
        $region33: #{tpu_custom_call.1} parent=11 // pred_check
          %p276 = pneg %p174
        $region34: #{tpu_custom_call.1} parent=11 // pred_check_branch
          %278 = sbr.rel (%p276) target = $region36
        $region35: #{tpu_custom_call.1} parent=11 // pred_region
          %s280 = ssub.s32 16, 16
          %281 = vsyncadd [#allocation12], %s280
          %s283 = sshll.u32 [#allocation13], 4
          %s284 = int_to_ptr.vmem [resolvable:$true] %s283
          %286 = dma.hbm_to_vmem [thread:$0]  %s6, 16, %s284, [#allocation12]
        $region36: #{tpu_custom_call.1} parent=11 // pred_fallthru
          _
      $region12: #{tpu_custom_call.1} parent=5 // pred_fallthru
        _
      %p287 = scmp.lt.s32.totalorder %s22, 2
      // Predicated region
      $region37: #{tpu_custom_call.1} parent=5 // pred_check
        %p288 = pneg %p287
      $region38: #{tpu_custom_call.1} parent=5 // pred_check_branch
        %290 = sbr.rel (%p288) target = $region40
      $region39: #{tpu_custom_call.1} parent=5 // pred_region
        // Predicated region
        $region41: #{tpu_custom_call.1} parent=39 // pred_check
          %p291 = pneg %p42
        $region42: #{tpu_custom_call.1} parent=39 // pred_check_branch
          %293 = sbr.rel (%p291) target = $region44
        $region43: #{tpu_custom_call.1} parent=39 // pred_region
          %s294 = sand.u32 %s32, 1
          %s295 = scalar_lea.sflag [#allocation3], %s294
          %s296 = sand.u32 %s32, 1
          %s297 = smul.addr %s296, 8
          %s298 = scalar_lea.vmem [#allocation2], %s297
          %s300 = ssub.s32 128, 128
          %301 = vsyncadd %s295, %s300
          %s302 = smul.addr %s22, 128
          %s303 = scalar_lea.hbm %s0, %s302
          %s305 = sshll.u32 %s298, 4
          %s306 = int_to_ptr.vmem [resolvable:$true] %s305
          %308 = dma.hbm_to_vmem [thread:$0]  %s303, 128, %s306, %s295
        $region44: #{tpu_custom_call.1} parent=39 // pred_fallthru
          _
      $region40: #{tpu_custom_call.1} parent=5 // pred_fallthru
        _
      %p309 = scmp.le.s32.totalorder 1, %s22
      %p310 = scmp.lt.s32.totalorder %s22, 3
      %p311 = pnand %p309, %p310
      %p312 = pneg %p311
      // Predicated region
      $region45: #{tpu_custom_call.1} parent=5 // pred_check
        _
      $region46: #{tpu_custom_call.1} parent=5 // pred_check_branch
        %314 = sbr.rel (%p311) target = $region48
      $region47: #{tpu_custom_call.1} parent=5 // pred_region
        %s315 = ssub.s32 %s22, 1
        %s316 = sand.u32 %s35, 1
        %s317 = scalar_lea.sflag [#allocation3], %s316
        %s318 = sand.u32 %s35, 1
        %s319 = smul.addr %s318, 8
        %s320 = scalar_lea.vmem [#allocation2], %s319
        // Predicated region
        $region49: #{tpu_custom_call.1} parent=47 // pred_check
          %p321 = pneg %p48
        $region50: #{tpu_custom_call.1} parent=47 // pred_check_branch
          %323 = sbr.rel (%p321) target = $region52
        $region51: #{tpu_custom_call.1} parent=47 // pred_region
          %324 = dma.done %s317, 128
        $region52: #{tpu_custom_call.1} parent=47 // pred_fallthru
          _
        // Predicated region
        $region53: #{tpu_custom_call.1} parent=47 // pred_check
          %p325 = pneg %p69
        $region54: #{tpu_custom_call.1} parent=47 // pred_check_branch
          %327 = sbr.rel (%p325) target = $region56
        $region55: #{tpu_custom_call.1} parent=47 // pred_region
          %328 = dma.done [#allocation6], 128
        $region56: #{tpu_custom_call.1} parent=47 // pred_fallthru
          _
        // Predicated region
        $region57: #{tpu_custom_call.1} parent=47 // pred_check
          %p329 = pneg %p90
        $region58: #{tpu_custom_call.1} parent=47 // pred_check_branch
          %331 = sbr.rel (%p329) target = $region60
        $region59: #{tpu_custom_call.1} parent=47 // pred_region
          %332 = dma.done [#allocation6], 2048
        $region60: #{tpu_custom_call.1} parent=47 // pred_fallthru
          _
        // Predicated region
        $region61: #{tpu_custom_call.1} parent=47 // pred_check
          %p333 = pneg %p111
        $region62: #{tpu_custom_call.1} parent=47 // pred_check_branch
          %335 = sbr.rel (%p333) target = $region64
        $region63: #{tpu_custom_call.1} parent=47 // pred_region
          %336 = dma.done [#allocation9], 32
        $region64: #{tpu_custom_call.1} parent=47 // pred_fallthru
          _
        // Predicated region
        $region65: #{tpu_custom_call.1} parent=47 // pred_check
          %p337 = pneg %p132
        $region66: #{tpu_custom_call.1} parent=47 // pred_check_branch
          %339 = sbr.rel (%p337) target = $region68
        $region67: #{tpu_custom_call.1} parent=47 // pred_region
          %340 = dma.done [#allocation9], 2048
        $region68: #{tpu_custom_call.1} parent=47 // pred_fallthru
          _
        // Predicated region
        $region69: #{tpu_custom_call.1} parent=47 // pred_check
          %p341 = pneg %p153
        $region70: #{tpu_custom_call.1} parent=47 // pred_check_branch
          %343 = sbr.rel (%p341) target = $region72
        $region71: #{tpu_custom_call.1} parent=47 // pred_region
          %344 = dma.done [#allocation12], 2048
        $region72: #{tpu_custom_call.1} parent=47 // pred_fallthru
          _
        // Predicated region
        $region73: #{tpu_custom_call.1} parent=47 // pred_check
          %p345 = pneg %p174
        $region74: #{tpu_custom_call.1} parent=47 // pred_check_branch
          %347 = sbr.rel (%p345) target = $region76
        $region75: #{tpu_custom_call.1} parent=47 // pred_region
          %348 = dma.done [#allocation12], 16
        $region76: #{tpu_custom_call.1} parent=47 // pred_fallthru
          _
        %s349 = sand.u32 %s35, 1
        %s350 = scalar_lea.sflag [#allocation3], %s349
        %s351 = sand.u32 %s35, 1
        %s352 = smul.addr %s351, 8
        %s353 = scalar_lea.vmem [#allocation2], %s352
        %p354 = pneg %p48
        %p355 = pneg %p45
        %p356 = pneg %p69
        %p357 = pneg %p66
        %p358 = pneg %p90
        %p359 = pneg %p87
        %p360 = pneg %p111
        %p361 = pneg %p108
        %p362 = pneg %p132
        %p363 = pneg %p129
        %p364 = pneg %p153
        %p365 = pneg %p150
        %p366 = pneg %p174
        %p367 = pneg %p171
        %p368 = pneg %p200
        %p369 = pneg %p197
        %s370 = sand.u32 %s187, 1
        %s371 = scalar_lea.sflag [#allocation4], %s370
        %s372 = sand.u32 %s187, 1
        %s373 = smul.addr %s372, 64
        %s374 = scalar_lea.vmem [#allocation14], %s373
        %s375 = smul.u32 8, %s27
        %v377 = vld [vmem:[%s320] sm:$0xff]
        %v378 = vpack.c.bf16 %v377, %v377
        %v379 = vld [vmem:[#allocation7] sm:$0xff]
        %v380 = vld [vmem:[#allocation7 + $0x8] sm:$0xff]
        %v381 = vld [vmem:[#allocation7 + $0x10] sm:$0xff]
        %v382 = vld [vmem:[#allocation7 + $0x18] sm:$0xff]
        %v383 = vld [vmem:[#allocation7 + $0x20] sm:$0xff]
        %v384 = vld [vmem:[#allocation7 + $0x28] sm:$0xff]
        %v385 = vld [vmem:[#allocation7 + $0x30] sm:$0xff]
        %v386 = vld [vmem:[#allocation7 + $0x38] sm:$0xff]
        %v387 = vld [vmem:[#allocation7 + $0x40] sm:$0xff]
        %v388 = vld [vmem:[#allocation7 + $0x48] sm:$0xff]
        %v389 = vld [vmem:[#allocation7 + $0x50] sm:$0xff]
        %v390 = vld [vmem:[#allocation7 + $0x58] sm:$0xff]
        %v391 = vld [vmem:[#allocation7 + $0x60] sm:$0xff]
        %v392 = vld [vmem:[#allocation7 + $0x68] sm:$0xff]
        %v393 = vld [vmem:[#allocation7 + $0x70] sm:$0xff]
        %v394 = vld [vmem:[#allocation7 + $0x78] sm:$0xff]
        %v395 = vld [vmem:[#allocation8] sm:$0x3]
        %v397 = vlaneseq
        %v398 = vshrl.u32 %v397, 7
        %v399 = vsub.s32 0, %v398
        %v400 = vrot.slane %v395, %v399
        %v401 = vlaneseq
        %v402 = vshrl.u32 %v401, 7
        %v403 = vsub.s32 1, %v402
        %v404 = vrot.slane %v395, %v403
        %v423 = vunpack.c.l.b16 %v379
        %v424 = vunpack.c.h.b16 %v379
        %v425 = vunpack.c.l.b16 %v380
        %v426 = vunpack.c.h.b16 %v380
        %v427 = vunpack.c.l.b16 %v381
        %v428 = vunpack.c.h.b16 %v381
        %v429 = vunpack.c.l.b16 %v382
        %v430 = vunpack.c.h.b16 %v382
        %v431 = vunpack.c.l.b16 %v383
        %v432 = vunpack.c.h.b16 %v383
        %v433 = vunpack.c.l.b16 %v384
        %v434 = vunpack.c.h.b16 %v384
        %v435 = vunpack.c.l.b16 %v385
        %v436 = vunpack.c.h.b16 %v385
        %v437 = vunpack.c.l.b16 %v386
        %v438 = vunpack.c.h.b16 %v386
        %v439 = vunpack.c.l.b16 %v387
        %v440 = vunpack.c.h.b16 %v387
        %v441 = vunpack.c.l.b16 %v388
        %v442 = vunpack.c.h.b16 %v388
        %v443 = vunpack.c.l.b16 %v389
        %v444 = vunpack.c.h.b16 %v389
        %v445 = vunpack.c.l.b16 %v390
        %v446 = vunpack.c.h.b16 %v390
        %v447 = vunpack.c.l.b16 %v391
        %v448 = vunpack.c.h.b16 %v391
        %v449 = vunpack.c.l.b16 %v392
        %v450 = vunpack.c.h.b16 %v392
        %v451 = vunpack.c.l.b16 %v393
        %v452 = vunpack.c.h.b16 %v393
        %v453 = vunpack.c.l.b16 %v394
        %v454 = vunpack.c.h.b16 %v394
        %v455 = vpack.c.b16 %v425, %v423
        %v456 = vpack.c.b16 %v426, %v424
        %v457 = vpack.c.b16 %v429, %v427
        %v458 = vpack.c.b16 %v430, %v428
        %v459 = vpack.c.b16 %v433, %v431
        %v460 = vpack.c.b16 %v434, %v432
        %v461 = vpack.c.b16 %v437, %v435
        %v462 = vpack.c.b16 %v438, %v436
        %v463 = vpack.c.b16 %v441, %v439
        %v464 = vpack.c.b16 %v442, %v440
        %v465 = vpack.c.b16 %v445, %v443
        %v466 = vpack.c.b16 %v446, %v444
        %v467 = vpack.c.b16 %v449, %v447
        %v468 = vpack.c.b16 %v450, %v448
        %v469 = vpack.c.b16 %v453, %v451
        %v470 = vpack.c.b16 %v454, %v452
        %487 = vmatprep.subr.bf16.mxu0 %v456
        %488 = vmatpush1.bf16.msra.mxu0 %v455
        %489 = vmatprep.subr.bf16.mxu0 %v458
        %490 = vmatpush1.bf16.msra.mxu0 %v457
        %491 = vmatprep.subr.bf16.mxu0 %v460
        %492 = vmatpush1.bf16.msra.mxu0 %v459
        %493 = vmatprep.subr.bf16.mxu0 %v462
        %494 = vmatpush1.bf16.msra.mxu0 %v461
        %495 = vmatprep.subr.bf16.mxu0 %v464
        %496 = vmatpush1.bf16.msra.mxu0 %v463
        %497 = vmatprep.subr.bf16.mxu0 %v466
        %498 = vmatpush1.bf16.msra.mxu0 %v465
        %499 = vmatprep.subr.bf16.mxu0 %v468
        %500 = vmatpush1.bf16.msra.mxu0 %v467
        %501 = vmatprep.subr.bf16.mxu0 %v470
        %502 = vmatpush1.bf16.msra.mxu0 %v469
        %503 = vmatprep.subr.bf16.mxu0 0
        %504 = vmatpush1.bf16.msra.mxu0 0
        %505 = vmatprep.subr.bf16.mxu0 0
        %506 = vmatpush1.bf16.msra.mxu0 0
        %507 = vmatprep.subr.bf16.mxu0 0
        %508 = vmatpush1.bf16.msra.mxu0 0
        %509 = vmatprep.subr.bf16.mxu0 0
        %510 = vmatpush1.bf16.msra.mxu0 0
        %511 = vmatprep.subr.bf16.mxu0 0
        %512 = vmatpush1.bf16.msra.mxu0 0
        %513 = vmatprep.subr.bf16.mxu0 0
        %514 = vmatpush1.bf16.msra.mxu0 0
        %515 = vmatprep.subr.bf16.mxu0 0
        %516 = vmatpush1.bf16.msra.mxu0 0
        %517 = vmatprep.subr.bf16.mxu0 0
        %518 = vmatpush1.bf16.msra.mxu0 0
        %519 = vmatprep.mubr.bf16.mxu0 0
        %520 = vmatmul.mubr.bf16.gmra.mrb[0].mxu0 %v378
        %v521 = vpop.f32.mrb[0].mxu0
        %v522 = vadd.f32 %v400, %v521
        %v523 = vpop.f32.mrb[0].mxu0
        %v524 = vadd.f32 %v404, %v523
        %v525 = vpop.f32.mrb[0].mxu0
        %v526 = vpop.f32.mrb[0].mxu0
        %527 = vdwg.mxu0
        %v528 = vld [vmem:[#allocation5] sm:$0xff]
        %v529 = vpack.c.bf16 %v528, %v528
        %v530 = vld [vmem:[#allocation10] sm:$0xff]
        %v531 = vld [vmem:[#allocation10 + $0x8] sm:$0xff]
        %v532 = vld [vmem:[#allocation10 + $0x10] sm:$0xff]
        %v533 = vld [vmem:[#allocation10 + $0x18] sm:$0xff]
        %v534 = vld [vmem:[#allocation10 + $0x20] sm:$0xff]
        %v535 = vld [vmem:[#allocation10 + $0x28] sm:$0xff]
        %v536 = vld [vmem:[#allocation10 + $0x30] sm:$0xff]
        %v537 = vld [vmem:[#allocation10 + $0x38] sm:$0xff]
        %v538 = vld [vmem:[#allocation10 + $0x40] sm:$0xff]
        %v539 = vld [vmem:[#allocation10 + $0x48] sm:$0xff]
        %v540 = vld [vmem:[#allocation10 + $0x50] sm:$0xff]
        %v541 = vld [vmem:[#allocation10 + $0x58] sm:$0xff]
        %v542 = vld [vmem:[#allocation10 + $0x60] sm:$0xff]
        %v543 = vld [vmem:[#allocation10 + $0x68] sm:$0xff]
        %v544 = vld [vmem:[#allocation10 + $0x70] sm:$0xff]
        %v545 = vld [vmem:[#allocation10 + $0x78] sm:$0xff]
        %v562 = vunpack.c.l.b16 %v530
        %v563 = vunpack.c.h.b16 %v530
        %v564 = vunpack.c.l.b16 %v531
        %v565 = vunpack.c.h.b16 %v531
        %v566 = vunpack.c.l.b16 %v532
        %v567 = vunpack.c.h.b16 %v532
        %v568 = vunpack.c.l.b16 %v533
        %v569 = vunpack.c.h.b16 %v533
        %v570 = vunpack.c.l.b16 %v534
        %v571 = vunpack.c.h.b16 %v534
        %v572 = vunpack.c.l.b16 %v535
        %v573 = vunpack.c.h.b16 %v535
        %v574 = vunpack.c.l.b16 %v536
        %v575 = vunpack.c.h.b16 %v536
        %v576 = vunpack.c.l.b16 %v537
        %v577 = vunpack.c.h.b16 %v537
        %v578 = vunpack.c.l.b16 %v538
        %v579 = vunpack.c.h.b16 %v538
        %v580 = vunpack.c.l.b16 %v539
        %v581 = vunpack.c.h.b16 %v539
        %v582 = vunpack.c.l.b16 %v540
        %v583 = vunpack.c.h.b16 %v540
        %v584 = vunpack.c.l.b16 %v541
        %v585 = vunpack.c.h.b16 %v541
        %v586 = vunpack.c.l.b16 %v542
        %v587 = vunpack.c.h.b16 %v542
        %v588 = vunpack.c.l.b16 %v543
        %v589 = vunpack.c.h.b16 %v543
        %v590 = vunpack.c.l.b16 %v544
        %v591 = vunpack.c.h.b16 %v544
        %v592 = vunpack.c.l.b16 %v545
        %v593 = vunpack.c.h.b16 %v545
        %v594 = vpack.c.b16 %v564, %v562
        %v595 = vpack.c.b16 %v565, %v563
        %v596 = vpack.c.b16 %v568, %v566
        %v597 = vpack.c.b16 %v569, %v567
        %v598 = vpack.c.b16 %v572, %v570
        %v599 = vpack.c.b16 %v573, %v571
        %v600 = vpack.c.b16 %v576, %v574
        %v601 = vpack.c.b16 %v577, %v575
        %v602 = vpack.c.b16 %v580, %v578
        %v603 = vpack.c.b16 %v581, %v579
        %v604 = vpack.c.b16 %v584, %v582
        %v605 = vpack.c.b16 %v585, %v583
        %v606 = vpack.c.b16 %v588, %v586
        %v607 = vpack.c.b16 %v589, %v587
        %v608 = vpack.c.b16 %v592, %v590
        %v609 = vpack.c.b16 %v593, %v591
        %626 = vmatprep.subr.bf16.mxu0 %v595
        %627 = vmatpush1.bf16.msra.mxu0 %v594
        %628 = vmatprep.subr.bf16.mxu0 %v597
        %629 = vmatpush1.bf16.msra.mxu0 %v596
        %630 = vmatprep.subr.bf16.mxu0 %v599
        %631 = vmatpush1.bf16.msra.mxu0 %v598
        %632 = vmatprep.subr.bf16.mxu0 %v601
        %633 = vmatpush1.bf16.msra.mxu0 %v600
        %634 = vmatprep.subr.bf16.mxu0 %v603
        %635 = vmatpush1.bf16.msra.mxu0 %v602
        %636 = vmatprep.subr.bf16.mxu0 %v605
        %637 = vmatpush1.bf16.msra.mxu0 %v604
        %638 = vmatprep.subr.bf16.mxu0 %v607
        %639 = vmatpush1.bf16.msra.mxu0 %v606
        %640 = vmatprep.subr.bf16.mxu0 %v609
        %641 = vmatpush1.bf16.msra.mxu0 %v608
        %642 = vmatprep.subr.bf16.mxu0 0
        %643 = vmatpush1.bf16.msra.mxu0 0
        %644 = vmatprep.subr.bf16.mxu0 0
        %645 = vmatpush1.bf16.msra.mxu0 0
        %646 = vmatprep.subr.bf16.mxu0 0
        %647 = vmatpush1.bf16.msra.mxu0 0
        %648 = vmatprep.subr.bf16.mxu0 0
        %649 = vmatpush1.bf16.msra.mxu0 0
        %650 = vmatprep.subr.bf16.mxu0 0
        %651 = vmatpush1.bf16.msra.mxu0 0
        %652 = vmatprep.subr.bf16.mxu0 0
        %653 = vmatpush1.bf16.msra.mxu0 0
        %654 = vmatprep.subr.bf16.mxu0 0
        %655 = vmatpush1.bf16.msra.mxu0 0
        %656 = vmatprep.subr.bf16.mxu0 0
        %657 = vmatpush1.bf16.msra.mxu0 0
        %658 = vmatprep.mubr.bf16.mxu0 0
        %659 = vmatmul.mubr.bf16.gmra.mrb[0].mxu0 %v529
        %v660 = vpop.f32.mrb[0].mxu0
        %v661 = vadd.f32 0.0, %v660
        %v662 = vpop.f32.mrb[0].mxu0
        %v663 = vadd.f32 0.0, %v662
        %v664 = vpop.f32.mrb[0].mxu0
        %v665 = vpop.f32.mrb[0].mxu0
        %666 = vdwg.mxu0
        %v669 = vcombine.low %v522, %v524
        %v670 = vcombine.high %v522, %v524
        %v672 = vunpack.c.l.s4 1966171168
        %v673 = vunpack.c.0.s8 %v672
        %v674 = vlaneseq
        %v675 = vshrl.u32 %v674, 7
        %v676 = vsub.s32 %v673, %v675
        %v677 = vrot.slane %v669, %v676
        %v679 = vunpack.c.l.s4 1966171168
        %v680 = vunpack.c.0.s8 %v679
        %v681 = vlaneseq
        %v682 = vshrl.u32 %v681, 7
        %v683 = vsub.s32 %v680, %v682
        %v684 = vrot.slane %v670, %v683
        %v685 = vcombine.high %v677, %v677
        %v686 = vcombine.high %v684, %v684
        %v688 = vunpack.c.l.s4 1966171168
        %v689 = vunpack.c.0.s8 %v688
        %v690 = vlaneseq
        %v691 = vshrl.u32 %v690, 7
        %v692 = vsub.s32 %v689, %v691
        %v693 = vrot.slane %v677, %v692
        %v695 = vunpack.c.l.s4 1966171168
        %v696 = vunpack.c.0.s8 %v695
        %v697 = vlaneseq
        %v698 = vshrl.u32 %v697, 7
        %v699 = vsub.s32 %v696, %v698
        %v700 = vrot.slane %v684, %v699
        %v702 = vunpack.c.l.s4 1966171168
        %v703 = vunpack.c.0.s8 %v702
        %v704 = vlaneseq
        %v705 = vshrl.u32 %v704, 7
        %v706 = vsub.s32 %v703, %v705
        %v707 = vrot.slane %v685, %v706
        %v709 = vunpack.c.l.s4 1966171168
        %v710 = vunpack.c.0.s8 %v709
        %v711 = vlaneseq
        %v712 = vshrl.u32 %v711, 7
        %v713 = vsub.s32 %v710, %v712
        %v714 = vrot.slane %v686, %v713
        %v715 = vcombine.high %v693, %v693
        %v716 = vcombine.high %v700, %v700
        %v717 = vcombine.high %v707, %v707
        %v718 = vcombine.high %v714, %v714
        %v719 = vlaneseq
        %v720 = vshrl.u32 %v719, 7
        %v721 = vsub.s32 0, %v720
        %v722 = vrot.slane %v693, %v721
        %v723 = vlaneseq
        %v724 = vshrl.u32 %v723, 7
        %v725 = vsub.s32 1, %v724
        %v726 = vrot.slane %v693, %v725
        %v727 = vlaneseq
        %v728 = vshrl.u32 %v727, 7
        %v729 = vsub.s32 0, %v728
        %v730 = vrot.slane %v707, %v729
        %v731 = vlaneseq
        %v732 = vshrl.u32 %v731, 7
        %v733 = vsub.s32 1, %v732
        %v734 = vrot.slane %v707, %v733
        %v735 = vlaneseq
        %v736 = vshrl.u32 %v735, 7
        %v737 = vsub.s32 0, %v736
        %v738 = vrot.slane %v715, %v737
        %v739 = vlaneseq
        %v740 = vshrl.u32 %v739, 7
        %v741 = vsub.s32 1, %v740
        %v742 = vrot.slane %v715, %v741
        %v743 = vlaneseq
        %v744 = vshrl.u32 %v743, 7
        %v745 = vsub.s32 0, %v744
        %v746 = vrot.slane %v717, %v745
        %v747 = vlaneseq
        %v748 = vshrl.u32 %v747, 7
        %v749 = vsub.s32 1, %v748
        %v750 = vrot.slane %v717, %v749
        %v751 = vlaneseq
        %v752 = vshrl.u32 %v751, 7
        %v753 = vsub.s32 0, %v752
        %v754 = vrot.slane %v700, %v753
        %v755 = vlaneseq
        %v756 = vshrl.u32 %v755, 7
        %v757 = vsub.s32 1, %v756
        %v758 = vrot.slane %v700, %v757
        %v759 = vlaneseq
        %v760 = vshrl.u32 %v759, 7
        %v761 = vsub.s32 0, %v760
        %v762 = vrot.slane %v714, %v761
        %v763 = vlaneseq
        %v764 = vshrl.u32 %v763, 7
        %v765 = vsub.s32 1, %v764
        %v766 = vrot.slane %v714, %v765
        %v767 = vlaneseq
        %v768 = vshrl.u32 %v767, 7
        %v769 = vsub.s32 0, %v768
        %v770 = vrot.slane %v716, %v769
        %v771 = vlaneseq
        %v772 = vshrl.u32 %v771, 7
        %v773 = vsub.s32 1, %v772
        %v774 = vrot.slane %v716, %v773
        %v775 = vlaneseq
        %v776 = vshrl.u32 %v775, 7
        %v777 = vsub.s32 0, %v776
        %v778 = vrot.slane %v718, %v777
        %v779 = vlaneseq
        %v780 = vshrl.u32 %v779, 7
        %v781 = vsub.s32 1, %v780
        %v782 = vrot.slane %v718, %v781
        %v799 = vadd.f32 %v722, %v661
        %v800 = vadd.f32 %v726, %v663
        %v801 = vadd.f32 %v730, %v661
        %v802 = vadd.f32 %v734, %v663
        %v803 = vadd.f32 %v738, %v661
        %v804 = vadd.f32 %v742, %v663
        %v805 = vadd.f32 %v746, %v661
        %v806 = vadd.f32 %v750, %v663
        %v807 = vadd.f32 %v754, %v661
        %v808 = vadd.f32 %v758, %v663
        %v809 = vadd.f32 %v762, %v661
        %v810 = vadd.f32 %v766, %v663
        %v811 = vadd.f32 %v770, %v661
        %v812 = vadd.f32 %v774, %v663
        %v813 = vadd.f32 %v778, %v661
        %v814 = vadd.f32 %v782, %v663
        %v815 = vmax.f32 %v799, 0.0
        %v816 = vmax.f32 %v800, 0.0
        %v817 = vmax.f32 %v801, 0.0
        %v818 = vmax.f32 %v802, 0.0
        %v819 = vmax.f32 %v803, 0.0
        %v820 = vmax.f32 %v804, 0.0
        %v821 = vmax.f32 %v805, 0.0
        %v822 = vmax.f32 %v806, 0.0
        %v823 = vmax.f32 %v807, 0.0
        %v824 = vmax.f32 %v808, 0.0
        %v825 = vmax.f32 %v809, 0.0
        %v826 = vmax.f32 %v810, 0.0
        %v827 = vmax.f32 %v811, 0.0
        %v828 = vmax.f32 %v812, 0.0
        %v829 = vmax.f32 %v813, 0.0
        %v830 = vmax.f32 %v814, 0.0
        %v831 = vpack.c.bf16 %v817, %v815
        %v832 = vpack.c.bf16 %v818, %v816
        %v833 = vpack.c.bf16 %v821, %v819
        %v834 = vpack.c.bf16 %v822, %v820
        %v835 = vpack.c.bf16 %v825, %v823
        %v836 = vpack.c.bf16 %v826, %v824
        %v837 = vpack.c.bf16 %v829, %v827
        %v838 = vpack.c.bf16 %v830, %v828
        %v839 = vld [vmem:[#allocation11] sm:$0xf]
        %v840 = vld [vmem:[#allocation11 + $0x4] sm:$0xf]
        %v841 = vld [vmem:[#allocation11 + $0x8] sm:$0xf]
        %v842 = vld [vmem:[#allocation11 + $0xc] sm:$0xf]
        %v843 = vld [vmem:[#allocation11 + $0x10] sm:$0xf]
        %v844 = vld [vmem:[#allocation11 + $0x14] sm:$0xf]
        %v845 = vld [vmem:[#allocation11 + $0x18] sm:$0xf]
        %v846 = vld [vmem:[#allocation11 + $0x1c] sm:$0xf]
        %v847 = vld [vmem:[#allocation11 + $0x20] sm:$0xf]
        %v848 = vld [vmem:[#allocation11 + $0x24] sm:$0xf]
        %v849 = vld [vmem:[#allocation11 + $0x28] sm:$0xf]
        %v850 = vld [vmem:[#allocation11 + $0x2c] sm:$0xf]
        %v851 = vld [vmem:[#allocation11 + $0x30] sm:$0xf]
        %v852 = vld [vmem:[#allocation11 + $0x34] sm:$0xf]
        %v853 = vld [vmem:[#allocation11 + $0x38] sm:$0xf]
        %v854 = vld [vmem:[#allocation11 + $0x3c] sm:$0xf]
        %v855 = vld [vmem:[#allocation11 + $0x40] sm:$0xf]
        %v856 = vld [vmem:[#allocation11 + $0x44] sm:$0xf]
        %v857 = vld [vmem:[#allocation11 + $0x48] sm:$0xf]
        %v858 = vld [vmem:[#allocation11 + $0x4c] sm:$0xf]
        %v859 = vld [vmem:[#allocation11 + $0x50] sm:$0xf]
        %v860 = vld [vmem:[#allocation11 + $0x54] sm:$0xf]
        %v861 = vld [vmem:[#allocation11 + $0x58] sm:$0xf]
        %v862 = vld [vmem:[#allocation11 + $0x5c] sm:$0xf]
        %v863 = vld [vmem:[#allocation11 + $0x60] sm:$0xf]
        %v864 = vld [vmem:[#allocation11 + $0x64] sm:$0xf]
        %v865 = vld [vmem:[#allocation11 + $0x68] sm:$0xf]
        %v866 = vld [vmem:[#allocation11 + $0x6c] sm:$0xf]
        %v867 = vld [vmem:[#allocation11 + $0x70] sm:$0xf]
        %v868 = vld [vmem:[#allocation11 + $0x74] sm:$0xf]
        %v869 = vld [vmem:[#allocation11 + $0x78] sm:$0xf]
        %v870 = vld [vmem:[#allocation11 + $0x7c] sm:$0xf]
        %v871 = vld [vmem:[#allocation13] sm:$0x1]
        %v873 = vlaneseq
        %v874 = vshrl.u32 %v873, 7
        %v875 = vsub.s32 0, %v874
        %v876 = vrot.slane %v871, %v875
        %v910 = vunpack.c.l.b16 %v839
        %v911 = vunpack.c.l.b16 %v840
        %v912 = vunpack.c.l.b16 %v841
        %v913 = vunpack.c.l.b16 %v842
        %v914 = vunpack.c.l.b16 %v843
        %v915 = vunpack.c.l.b16 %v844
        %v916 = vunpack.c.l.b16 %v845
        %v917 = vunpack.c.l.b16 %v846
        %v918 = vunpack.c.l.b16 %v847
        %v919 = vunpack.c.l.b16 %v848
        %v920 = vunpack.c.l.b16 %v849
        %v921 = vunpack.c.l.b16 %v850
        %v922 = vunpack.c.l.b16 %v851
        %v923 = vunpack.c.l.b16 %v852
        %v924 = vunpack.c.l.b16 %v853
        %v925 = vunpack.c.l.b16 %v854
        %v926 = vunpack.c.l.b16 %v855
        %v927 = vunpack.c.l.b16 %v856
        %v928 = vunpack.c.l.b16 %v857
        %v929 = vunpack.c.l.b16 %v858
        %v930 = vunpack.c.l.b16 %v859
        %v931 = vunpack.c.l.b16 %v860
        %v932 = vunpack.c.l.b16 %v861
        %v933 = vunpack.c.l.b16 %v862
        %v934 = vunpack.c.l.b16 %v863
        %v935 = vunpack.c.l.b16 %v864
        %v936 = vunpack.c.l.b16 %v865
        %v937 = vunpack.c.l.b16 %v866
        %v938 = vunpack.c.l.b16 %v867
        %v939 = vunpack.c.l.b16 %v868
        %v940 = vunpack.c.l.b16 %v869
        %v941 = vunpack.c.l.b16 %v870
        %v942 = vpack.c.b16 %v911, %v910
        %v943 = vpack.c.b16 %v913, %v912
        %v944 = vpack.c.b16 %v915, %v914
        %v945 = vpack.c.b16 %v917, %v916
        %v946 = vpack.c.b16 %v919, %v918
        %v947 = vpack.c.b16 %v921, %v920
        %v948 = vpack.c.b16 %v923, %v922
        %v949 = vpack.c.b16 %v925, %v924
        %v950 = vpack.c.b16 %v927, %v926
        %v951 = vpack.c.b16 %v929, %v928
        %v952 = vpack.c.b16 %v931, %v930
        %v953 = vpack.c.b16 %v933, %v932
        %v954 = vpack.c.b16 %v935, %v934
        %v955 = vpack.c.b16 %v937, %v936
        %v956 = vpack.c.b16 %v939, %v938
        %v957 = vpack.c.b16 %v941, %v940
        %974 = vmatprep.subr.bf16.mxu0 0
        %975 = vmatpush1.bf16.msra.mxu0 %v942
        %976 = vmatprep.subr.bf16.mxu0 0
        %977 = vmatpush1.bf16.msra.mxu0 %v943
        %978 = vmatprep.subr.bf16.mxu0 0
        %979 = vmatpush1.bf16.msra.mxu0 %v944
        %980 = vmatprep.subr.bf16.mxu0 0
        %981 = vmatpush1.bf16.msra.mxu0 %v945
        %982 = vmatprep.subr.bf16.mxu0 0
        %983 = vmatpush1.bf16.msra.mxu0 %v946
        %984 = vmatprep.subr.bf16.mxu0 0
        %985 = vmatpush1.bf16.msra.mxu0 %v947
        %986 = vmatprep.subr.bf16.mxu0 0
        %987 = vmatpush1.bf16.msra.mxu0 %v948
        %988 = vmatprep.subr.bf16.mxu0 0
        %989 = vmatpush1.bf16.msra.mxu0 %v949
        %990 = vmatprep.subr.bf16.mxu0 0
        %991 = vmatpush1.bf16.msra.mxu0 %v950
        %992 = vmatprep.subr.bf16.mxu0 0
        %993 = vmatpush1.bf16.msra.mxu0 %v951
        %994 = vmatprep.subr.bf16.mxu0 0
        %995 = vmatpush1.bf16.msra.mxu0 %v952
        %996 = vmatprep.subr.bf16.mxu0 0
        %997 = vmatpush1.bf16.msra.mxu0 %v953
        %998 = vmatprep.subr.bf16.mxu0 0
        %999 = vmatpush1.bf16.msra.mxu0 %v954
        %1000 = vmatprep.subr.bf16.mxu0 0
        %1001 = vmatpush1.bf16.msra.mxu0 %v955
        %1002 = vmatprep.subr.bf16.mxu0 0
        %1003 = vmatpush1.bf16.msra.mxu0 %v956
        %1004 = vmatprep.subr.bf16.mxu0 0
        %1005 = vmatpush1.bf16.msra.mxu0 %v957
        %1006 = vmatprep.mubr.bf16.mxu0 %v832
        %1007 = vmatmul.mubr.bf16.gmra.mrb[0].mxu0 %v831
        %v1008 = vpop.f32.mrb[0].mxu0
        %v1009 = vadd.f32 %v876, %v1008
        %v1010 = vpop.f32.mrb[0].mxu0
        %v1011 = vpop.f32.mrb[0].mxu0
        %v1012 = vadd.f32 %v876, %v1011
        %v1013 = vpop.f32.mrb[0].mxu0
        %1014 = vmatprep.mubr.bf16.mxu0 %v834
        %1015 = vmatmul.mubr.bf16.gmra.mrb[0].mxu0 %v833
        %v1016 = vpop.f32.mrb[0].mxu0
        %v1017 = vadd.f32 %v876, %v1016
        %v1018 = vpop.f32.mrb[0].mxu0
        %v1019 = vpop.f32.mrb[0].mxu0
        %v1020 = vadd.f32 %v876, %v1019
        %v1021 = vpop.f32.mrb[0].mxu0
        %1022 = vmatprep.mubr.bf16.mxu0 %v836
        %1023 = vmatmul.mubr.bf16.gmra.mrb[0].mxu0 %v835
        %v1024 = vpop.f32.mrb[0].mxu0
        %v1025 = vadd.f32 %v876, %v1024
        %v1026 = vpop.f32.mrb[0].mxu0
        %v1027 = vpop.f32.mrb[0].mxu0
        %v1028 = vadd.f32 %v876, %v1027
        %v1029 = vpop.f32.mrb[0].mxu0
        %1030 = vmatprep.mubr.bf16.mxu0 %v838
        %1031 = vmatmul.mubr.bf16.gmra.mrb[0].mxu0 %v837
        %v1032 = vpop.f32.mrb[0].mxu0
        %v1033 = vadd.f32 %v876, %v1032
        %v1034 = vpop.f32.mrb[0].mxu0
        %v1035 = vpop.f32.mrb[0].mxu0
        %v1036 = vadd.f32 %v876, %v1035
        %v1037 = vpop.f32.mrb[0].mxu0
        %1038 = vdwg.mxu0
        %1039 = vst [vmem:[%s374] sm:$0xff] %v1009
        %1040 = vst [vmem:[%s374 + $0x8] sm:$0xff] %v1012
        %1041 = vst [vmem:[%s374 + $0x10] sm:$0xff] %v1017
        %1042 = vst [vmem:[%s374 + $0x18] sm:$0xff] %v1020
        %1043 = vst [vmem:[%s374 + $0x20] sm:$0xff] %v1025
        %1044 = vst [vmem:[%s374 + $0x28] sm:$0xff] %v1028
        %1045 = vst [vmem:[%s374 + $0x30] sm:$0xff] %v1033
        %1046 = vst [vmem:[%s374 + $0x38] sm:$0xff] %v1036
        %s1047 = sand.u32 %s187, 1
        %s1048 = scalar_lea.sflag [#allocation4], %s1047
        %s1049 = sand.u32 %s187, 1
        %s1050 = smul.addr %s1049, 64
        %s1051 = scalar_lea.vmem [#allocation14], %s1050
        // Predicated region
        $region77: #{tpu_custom_call.1} parent=47 // pred_check
          %p1052 = pneg %p197
        $region78: #{tpu_custom_call.1} parent=47 // pred_check_branch
          %1054 = sbr.rel (%p1052) target = $region80
        $region79: #{tpu_custom_call.1} parent=47 // pred_region
          %s1055 = smul.u32 8, %s27
          %s1057 = ssub.s32 1024, 1024
          %1058 = vsyncadd %s1048, %s1057
          %s1059 = smul.addr %s1055, 128
          %s1060 = scalar_lea.hbm %s7, %s1059
          %s1061 = sshll.u32 %s1051, 4
          %s1062 = int_to_ptr.vmem [resolvable:$true] %s1061
          %1067 = dma.vmem_to_hbm [thread:$0]  %s1062, 1024, %s1060, %s1048, 128, 128, 8
        $region80: #{tpu_custom_call.1} parent=47 // pred_fallthru
          _
      $region48: #{tpu_custom_call.1} parent=5 // pred_fallthru
        _
      %p1068 = scmp.le.s32.totalorder 2, %s22
      // Predicated region
      $region81: #{tpu_custom_call.1} parent=5 // pred_check
        %p1069 = pneg %p1068
      $region82: #{tpu_custom_call.1} parent=5 // pred_check_branch
        %1071 = sbr.rel (%p1069) target = $region84
      $region83: #{tpu_custom_call.1} parent=5 // pred_region
        %s1072 = ssub.s32 %s22, 2
        // Predicated region
        $region85: #{tpu_custom_call.1} parent=83 // pred_check
          %p1073 = pneg %p203
        $region86: #{tpu_custom_call.1} parent=83 // pred_check_branch
          %1075 = sbr.rel (%p1073) target = $region88
        $region87: #{tpu_custom_call.1} parent=83 // pred_region
          %s1076 = sand.u32 %s188, 1
          %s1077 = scalar_lea.sflag [#allocation4], %s1076
          %s1078 = sand.u32 %s188, 1
          %s1079 = smul.addr %s1078, 64
          %s1080 = scalar_lea.vmem [#allocation14], %s1079
          %1081 = dma.done %s1077, 1024
        $region88: #{tpu_custom_call.1} parent=83 // pred_fallthru
          _
      $region84: #{tpu_custom_call.1} parent=5 // pred_fallthru
        _
    $region6: #{tpu_custom_call.1} parent=1 // loop_footer
      %s26 = sadd.s32 1, %s22
    $region7: #{tpu_custom_call.1} parent=1 // loop_footer_branch
      %21 = sbr.rel target = $region3
    $region8: #{tpu_custom_call.1} parent=1 // loop_exit
      _
    %1082 = vsyncpa [#allocation3], 1
    %s1083 = scalar_lea.sflag [#allocation3], 1
    %1084 = vsyncpa %s1083, 1
    %1085 = vsyncpa [#allocation6], 1
    %1086 = vsyncpa [#allocation9], 1
    %1087 = vsyncpa [#allocation12], 1
    %1088 = vsyncpa [#allocation4], 1
    %s1089 = scalar_lea.sflag [#allocation4], 1
    %1090 = vsyncpa %s1089, 1

</llo_original>
